<compile_context>
chip_gen: v7x
topology: tpu7x:2x2x1
jax: 0.10.0
libtpu: 0.0.40
codegen_flags: <defaults>
</compile_context>

<pallas_src>
import jax
import jax.numpy as jnp
from jax.experimental import pallas as pl
from jax.experimental.pallas import tpu as pltpu


HIDDEN = 256
_LANE = 128


def _round_up(n, m):
    return ((n + m - 1) // m) * m


def _actor_kernel(scale_ref, x_ref, w1_ref, b1_ref, w2_ref, b2_ref,
                  w3_ref, b3_ref, out_ref):
    """One batch tile of: fc1 -> relu -> fc2 -> relu -> fc3 -> tanh * max_action.

    fc1 runs on the VPU (state_dim broadcast-FMAs); fc2/fc3 run on the MXU with
    bf16 operands and f32 accumulation; bias-add / relu / tanh stay in f32.
    """
    scale = scale_ref[0, 0]                                   # SMEM scalar

    x = x_ref[...]                                            # (TB, S) f32, unpadded
    w1 = w1_ref[...]                                          # (S, H)  f32

    # fc1 on the VPU: K = state_dim (tiny) -> avoid an MXU round trip.
    h1 = b1_ref[...]                                          # (1, H) broadcasts
    for s in range(w1_ref.shape[0]):                          # static unroll (S ~ 3)
        h1 = h1 + x[:, s:s + 1] * w1[s:s + 1, :]
    h1 = jnp.maximum(h1, 0.0)                                 # (TB, H) f32

    h2 = jnp.dot(h1.astype(jnp.bfloat16), w2_ref[...],
                 preferred_element_type=jnp.float32)          # (TB, H)
    h2 = jnp.maximum(h2 + b2_ref[...], 0.0)

    a = jnp.dot(h2.astype(jnp.bfloat16), w3_ref[...],
                preferred_element_type=jnp.float32)           # (TB, Ap)
    out_ref[...] = (jnp.tanh(a + b3_ref[...]) * scale).astype(out_ref.dtype)


def prepare_actor_params(params, state_dim, action_dim):
    """One-time casting/padding of parameters to the kernel layout.

    w1 stays f32 (VPU fc1 path, no padding needed). w2/w3 are bf16 MXU operands;
    w3/b3 get their output dim padded to a full 128-lane tile (zero padding is
    exact for Linear + tanh and the extra lanes are sliced off after the call).
    """
    w1, b1, w2, b2, w3, b3 = params
    Ap = _round_up(action_dim, _LANE)

    w1_p = w1.astype(jnp.float32)                             # (S, H)
    b1_p = b1.reshape(1, HIDDEN).astype(jnp.float32)
    w2_p = w2.astype(jnp.bfloat16)                            # (H, H)
    b2_p = b2.reshape(1, HIDDEN).astype(jnp.float32)
    w3_p = jnp.zeros((HIDDEN, Ap), jnp.bfloat16).at[:, :action_dim].set(
        w3.astype(jnp.bfloat16))
    b3_p = jnp.zeros((1, Ap), jnp.float32).at[0, :action_dim].set(b3)
    return (w1_p, b1_p, w2_p, b2_p, w3_p, b3_p)


def actor_forward(state, prepared_params, max_action, action_dim, block_b=128):
    """state: (B, state_dim) f32. Returns (B, action_dim) f32.

    Small batches (B <= block_b) run as a single block; larger batches are tiled
    along batch with weights kept VMEM-resident. No reduction happens over the
    batch axis, so boundary-block padding rows never contaminate valid outputs.
    """
    w1_p, b1_p, w2_p, b2_p, w3_p, b3_p = prepared_params
    B, S = state.shape
    Ap = w3_p.shape[1]

    TB = B if B <= block_b else block_b            # block_b is a multiple of 8
    grid = (pl.cdiv(B, TB),)

    scale = jnp.full((1, 1), max_action, jnp.float32)

    def resident(shape):                           # weights: same block every step
        return pl.BlockSpec(shape, lambda i: (0, 0))

    out = pl.pallas_call(
        _actor_kernel,
        out_shape=jax.ShapeDtypeStruct((B, Ap), jnp.float32),
        grid=grid,
        in_specs=[
            pl.BlockSpec((1, 1), lambda i: (0, 0),
                         memory_space=pltpu.MemorySpace.SMEM),   # max_action
            pl.BlockSpec((TB, S), lambda i: (i, 0)),             # state tile
            resident(w1_p.shape), resident(b1_p.shape),
            resident(w2_p.shape), resident(b2_p.shape),
            resident(w3_p.shape), resident(b3_p.shape),
        ],
        out_specs=pl.BlockSpec((TB, Ap), lambda i: (i, 0)),
        compiler_params=pltpu.CompilerParams(
            dimension_semantics=("parallel",)),                  # 2x on v7x megacore
    )(scale, state.astype(jnp.float32), w1_p, b1_p, w2_p, b2_p, w3_p, b3_p)

    return out[:, :action_dim]


def init_actor_params(key, state_dim, action_dim):
    """nn.Linear-style init: U(-1/sqrt(fan_in), 1/sqrt(fan_in)); weights (in, out)."""
    ks = jax.random.split(key, 6)

    def linear(kw, kb, fan_in, fan_out):
        bound = 1.0 / jnp.sqrt(float(fan_in))
        w = jax.random.uniform(kw, (fan_in, fan_out), jnp.float32, -bound, bound)
        b = jax.random.uniform(kb, (fan_out,), jnp.float32, -bound, bound)
        return w, b

    w1, b1 = linear(ks[0], ks[1], state_dim, HIDDEN)
    w2, b2 = linear(ks[2], ks[3], HIDDEN, HIDDEN)
    w3, b3 = linear(ks[4], ks[5], HIDDEN, action_dim)
    return (w1, b1, w2, b2, w3, b3)


def actor_forward_ref(state, params, max_action):
    """Pure-f32 reference of the original PyTorch forward."""
    w1, b1, w2, b2, w3, b3 = params
    x = jax.nn.relu(state @ w1 + b1)
    x = jax.nn.relu(x @ w2 + b2)
    return jnp.tanh(x @ w3 + b3) * max_action


def actor_forward_ref_kernel_math(state, params, max_action):
    """Reference mirroring the kernel numerics: f32 VPU fc1, bf16-operand fc2/fc3
    with f32 accumulation, f32 elementwise tail."""
    w1, b1, w2, b2, w3, b3 = params
    h = b1.reshape(1, -1)
    for s in range(state.shape[1]):
        h = h + state[:, s:s + 1] * w1[s:s + 1, :]
    h = jax.nn.relu(h)

    def mm(x, w):
        return jnp.dot(x.astype(jnp.bfloat16), w.astype(jnp.bfloat16),
                       preferred_element_type=jnp.float32)

    h = jax.nn.relu(mm(h, w2) + b2)
    return jnp.tanh(mm(h, w3) + b3) * max_action


if __name__ == "__main__":
    # Pendulum-v1: state_dim=3, action_dim=1, max_action=2.0
    state_dim, action_dim, max_action = 3, 1, 2.0

    key = jax.random.PRNGKey(0)
    pkey, skey1, skey2 = jax.random.split(key, 3)

    params = init_actor_params(pkey, state_dim, action_dim)
    prepared = prepare_actor_params(params, state_dim, action_dim)   # one-time

    # Acting path: tiny batch, single block, grid=(1,).
    state_small = jax.random.normal(skey1, (2, state_dim), jnp.float32)
    act_fn = jax.jit(lambda s: actor_forward(s, prepared, max_action, action_dim))
    a_small = jax.block_until_ready(act_fn(state_small))
    assert a_small.shape == (2, action_dim)

    # Training-sized path: batch grid (2 blocks), weights stay VMEM-resident.
    state_train = jax.random.normal(skey2, (32, state_dim), jnp.float32)
    train_fn = jax.jit(
        lambda s: actor_forward(s, prepared, max_action, action_dim, block_b=16))
    a_train = jax.block_until_ready(train_fn(state_train))
    assert a_train.shape == (32, action_dim)

    for s, a in ((state_small, a_small), (state_train, a_train)):
        # Tight check vs. a reference doing the same bf16-operand / f32-accum math.
        ref_same = actor_forward_ref_kernel_math(s, params, max_action)
        assert jnp.allclose(a, ref_same, atol=5e-3, rtol=5e-3)
        # Loose check vs. the pure-f32 PyTorch-equivalent math (bf16 weight quant).
        ref_f32 = actor_forward_ref(s, params, max_action)
        assert jnp.allclose(a, ref_f32, atol=5e-2, rtol=5e-2)

    print("KERNEL_OK")
</pallas_src>

<mosaic_0001>
module attributes {stable_mosaic.version = 11 : i64} {
  func.func @_actor_kernel(%arg0: i32, %arg1: memref<1x1xf32, #tpu.memory_space<smem>>, %arg2: memref<2x3xf32, #tpu.memory_space<vmem>>, %arg3: memref<3x256xf32, #tpu.memory_space<vmem>>, %arg4: memref<1x256xf32, #tpu.memory_space<vmem>>, %arg5: memref<256x256xbf16, #tpu.memory_space<vmem>>, %arg6: memref<1x256xf32, #tpu.memory_space<vmem>>, %arg7: memref<256x128xbf16, #tpu.memory_space<vmem>>, %arg8: memref<1x128xf32, #tpu.memory_space<vmem>>, %arg9: memref<2x128xf32, #tpu.memory_space<vmem>>) attributes {dimension_semantics = [#tpu.dimension_semantics<parallel>], iteration_bounds = array<i64: 1>, scalar_prefetch = 0 : i64, scratch_operands = 0 : i64, tpu.core_type = #tpu.core_type<tc>, window_params = [{transform_indices = @transform_0, window_bounds = array<i64: 1, 1>}, {transform_indices = @transform_1, window_bounds = array<i64: 2, 3>}, {pipeline_mode = #tpu.pipeline_mode<synchronous>, transform_indices = @transform_2, window_bounds = array<i64: 3, 256>}, {pipeline_mode = #tpu.pipeline_mode<synchronous>, transform_indices = @transform_3, window_bounds = array<i64: 1, 256>}, {pipeline_mode = #tpu.pipeline_mode<synchronous>, transform_indices = @transform_4, window_bounds = array<i64: 256, 256>}, {pipeline_mode = #tpu.pipeline_mode<synchronous>, transform_indices = @transform_5, window_bounds = array<i64: 1, 256>}, {pipeline_mode = #tpu.pipeline_mode<synchronous>, transform_indices = @transform_6, window_bounds = array<i64: 256, 128>}, {pipeline_mode = #tpu.pipeline_mode<synchronous>, transform_indices = @transform_7, window_bounds = array<i64: 1, 128>}, {transform_indices = @transform_8, window_bounds = array<i64: 2, 128>}]} {
    %c0 = arith.constant 0 : index
    %c0_0 = arith.constant 0 : index
    %0 = memref.load %arg1[%c0, %c0_0] : memref<1x1xf32, #tpu.memory_space<smem>>
    %c0_1 = arith.constant 0 : index
    %c0_2 = arith.constant 0 : index
    %1 = vector.load %arg2[%c0_1, %c0_2] : memref<2x3xf32, #tpu.memory_space<vmem>>, vector<2x3xf32>
    %c0_3 = arith.constant 0 : index
    %c0_4 = arith.constant 0 : index
    %2 = vector.load %arg3[%c0_3, %c0_4] : memref<3x256xf32, #tpu.memory_space<vmem>>, vector<3x256xf32>
    %c0_5 = arith.constant 0 : index
    %c0_6 = arith.constant 0 : index
    %3 = vector.load %arg4[%c0_5, %c0_6] : memref<1x256xf32, #tpu.memory_space<vmem>>, vector<1x256xf32>
    %4 = vector.extract_strided_slice %1 {offsets = [0, 0], sizes = [2, 1], strides = [1, 1]} : vector<2x3xf32> to vector<2x1xf32>
    %5 = vector.extract_strided_slice %2 {offsets = [0, 0], sizes = [1, 256], strides = [1, 1]} : vector<3x256xf32> to vector<1x256xf32>
    %6 = vector.broadcast %4 : vector<2x1xf32> to vector<2x256xf32>
    %7 = vector.broadcast %5 : vector<1x256xf32> to vector<2x256xf32>
    %8 = arith.mulf %6, %7 : vector<2x256xf32>
    %9 = vector.broadcast %3 : vector<1x256xf32> to vector<2x256xf32>
    %10 = arith.addf %9, %8 : vector<2x256xf32>
    %11 = vector.extract_strided_slice %1 {offsets = [0, 1], sizes = [2, 1], strides = [1, 1]} : vector<2x3xf32> to vector<2x1xf32>
    %12 = vector.extract_strided_slice %2 {offsets = [1, 0], sizes = [1, 256], strides = [1, 1]} : vector<3x256xf32> to vector<1x256xf32>
    %13 = vector.broadcast %11 : vector<2x1xf32> to vector<2x256xf32>
    %14 = vector.broadcast %12 : vector<1x256xf32> to vector<2x256xf32>
    %15 = arith.mulf %13, %14 : vector<2x256xf32>
    %16 = arith.addf %10, %15 : vector<2x256xf32>
    %17 = vector.extract_strided_slice %1 {offsets = [0, 2], sizes = [2, 1], strides = [1, 1]} : vector<2x3xf32> to vector<2x1xf32>
    %18 = vector.extract_strided_slice %2 {offsets = [2, 0], sizes = [1, 256], strides = [1, 1]} : vector<3x256xf32> to vector<1x256xf32>
    %19 = vector.broadcast %17 : vector<2x1xf32> to vector<2x256xf32>
    %20 = vector.broadcast %18 : vector<1x256xf32> to vector<2x256xf32>
    %21 = arith.mulf %19, %20 : vector<2x256xf32>
    %22 = arith.addf %16, %21 : vector<2x256xf32>
    %cst = arith.constant 0.000000e+00 : f32
    %23 = vector.broadcast %cst : f32 to vector<2x256xf32>
    %24 = arith.maximumf %22, %23 : vector<2x256xf32>
    %25 = arith.truncf %24 : vector<2x256xf32> to vector<2x256xbf16>
    %c0_7 = arith.constant 0 : index
    %c0_8 = arith.constant 0 : index
    %26 = vector.load %arg5[%c0_7, %c0_8] : memref<256x256xbf16, #tpu.memory_space<vmem>>, vector<256x256xbf16>
    %cst_9 = arith.constant dense<0.000000e+00> : vector<2x256xf32>
    %27 = tpu.matmul %25, %26, %cst_9 {dimension_numbers = #tpu.dot_dimension_numbers<[1], [0], [0], [1], [0, 0, 1, 1], [], []>} : vector<2x256xbf16>, vector<256x256xbf16>, vector<2x256xf32> -> vector<2x256xf32>
    %c0_10 = arith.constant 0 : index
    %c0_11 = arith.constant 0 : index
    %28 = vector.load %arg6[%c0_10, %c0_11] : memref<1x256xf32, #tpu.memory_space<vmem>>, vector<1x256xf32>
    %29 = vector.broadcast %28 : vector<1x256xf32> to vector<2x256xf32>
    %30 = arith.addf %27, %29 : vector<2x256xf32>
    %cst_12 = arith.constant 0.000000e+00 : f32
    %31 = vector.broadcast %cst_12 : f32 to vector<2x256xf32>
    %32 = arith.maximumf %30, %31 : vector<2x256xf32>
    %33 = arith.truncf %32 : vector<2x256xf32> to vector<2x256xbf16>
    %c0_13 = arith.constant 0 : index
    %c0_14 = arith.constant 0 : index
    %34 = vector.load %arg7[%c0_13, %c0_14] : memref<256x128xbf16, #tpu.memory_space<vmem>>, vector<256x128xbf16>
    %cst_15 = arith.constant dense<0.000000e+00> : vector<2x128xf32>
    %35 = tpu.matmul %33, %34, %cst_15 {dimension_numbers = #tpu.dot_dimension_numbers<[1], [0], [0], [1], [0, 0, 1, 1], [], []>} : vector<2x256xbf16>, vector<256x128xbf16>, vector<2x128xf32> -> vector<2x128xf32>
    %c0_16 = arith.constant 0 : index
    %c0_17 = arith.constant 0 : index
    %36 = vector.load %arg8[%c0_16, %c0_17] : memref<1x128xf32, #tpu.memory_space<vmem>>, vector<1x128xf32>
    %37 = vector.broadcast %36 : vector<1x128xf32> to vector<2x128xf32>
    %38 = arith.addf %35, %37 : vector<2x128xf32>
    %39 = math.tanh %38 : vector<2x128xf32>
    %40 = vector.broadcast %0 : f32 to vector<2x128xf32>
    %41 = arith.mulf %39, %40 : vector<2x128xf32>
    %c0_18 = arith.constant 0 : index
    %c0_19 = arith.constant 0 : index
    %42 = vector.load %arg9[%c0_18, %c0_19] : memref<2x128xf32, #tpu.memory_space<vmem>>, vector<2x128xf32>
    tpu.vector_store %arg9[%c0_18, %c0_19], %41 {strides = array<i32>} : memref<2x128xf32, #tpu.memory_space<vmem>>, vector<2x128xf32>,
    return
  }
  func.func @transform_0(%arg0: i32) -> (i32, i32) {
    %c0_i32 = arith.constant 0 : i32
    %c0_i32_0 = arith.constant 0 : i32
    %c0_i32_1 = arith.constant 0 : i32
    return %c0_i32, %c0_i32_0 : i32, i32
  }
  func.func @transform_1(%arg0: i32) -> (i32, i32) {
    %c0_i32 = arith.constant 0 : i32
    %c0_i32_0 = arith.constant 0 : i32
    return %arg0, %c0_i32 : i32, i32
  }
  func.func @transform_2(%arg0: i32) -> (i32, i32) {
    %c0_i32 = arith.constant 0 : i32
    %c0_i32_0 = arith.constant 0 : i32
    %c0_i32_1 = arith.constant 0 : i32
    return %c0_i32, %c0_i32_0 : i32, i32
  }
  func.func @transform_3(%arg0: i32) -> (i32, i32) {
    %c0_i32 = arith.constant 0 : i32
    %c0_i32_0 = arith.constant 0 : i32
    %c0_i32_1 = arith.constant 0 : i32
    return %c0_i32, %c0_i32_0 : i32, i32
  }
  func.func @transform_4(%arg0: i32) -> (i32, i32) {
    %c0_i32 = arith.constant 0 : i32
    %c0_i32_0 = arith.constant 0 : i32
    %c0_i32_1 = arith.constant 0 : i32
    return %c0_i32, %c0_i32_0 : i32, i32
  }
  func.func @transform_5(%arg0: i32) -> (i32, i32) {
    %c0_i32 = arith.constant 0 : i32
    %c0_i32_0 = arith.constant 0 : i32
    %c0_i32_1 = arith.constant 0 : i32
    return %c0_i32, %c0_i32_0 : i32, i32
  }
  func.func @transform_6(%arg0: i32) -> (i32, i32) {
    %c0_i32 = arith.constant 0 : i32
    %c0_i32_0 = arith.constant 0 : i32
    %c0_i32_1 = arith.constant 0 : i32
    return %c0_i32, %c0_i32_0 : i32, i32
  }
  func.func @transform_7(%arg0: i32) -> (i32, i32) {
    %c0_i32 = arith.constant 0 : i32
    %c0_i32_0 = arith.constant 0 : i32
    %c0_i32_1 = arith.constant 0 : i32
    return %c0_i32, %c0_i32_0 : i32, i32
  }
  func.func @transform_8(%arg0: i32) -> (i32, i32) {
    %c0_i32 = arith.constant 0 : i32
    %c0_i32_0 = arith.constant 0 : i32
    return %arg0, %c0_i32 : i32, i32
  }
}

</mosaic_0001>

<llo_original>
// kernel: _lambda_.1
$region0: #{_lambda_.1}
  #allocation0 [shape = 'u32[]', space=smem, size = 0x4, offset = 0x4, fixed_abs, tag = 'smem constant byte address 0x4 - core index']
  #allocation1 [shape = 'u32[144,128]{1,0:T(1,128)}', space=vmem, size = 0x12000, scoped, tag = 'internal scratch']
  #allocation2 [shape = 'f32[1,1]{1,0:T(1,128)S(6)}', space=smem, size = 0x200, scoped, tag = 'scoped memory for _lambda_.1']
  %s0 = inlined_call_operand.<no memory space> [shape: f32[1,1], index: 0, kind: input, shape index: {}]
  %s1 = inlined_call_operand.vmem [shape: f32[2,3], index: 1, kind: input, shape index: {}]
  %s2 = inlined_call_operand.vmem [shape: f32[3,256], index: 2, kind: input, shape index: {}]
  %s3 = inlined_call_operand.vmem [shape: f32[1,256], index: 3, kind: input, shape index: {}]
  %s4 = inlined_call_operand.vmem [shape: bf16[256,256], index: 4, kind: input, shape index: {}]
  %s5 = inlined_call_operand.vmem [shape: f32[1,256], index: 5, kind: input, shape index: {}]
  %s6 = inlined_call_operand.vmem [shape: bf16[256,128], index: 6, kind: input, shape index: {}]
  %s7 = inlined_call_operand.vmem [shape: f32[1,128], index: 7, kind: input, shape index: {}]
  %s8 = inlined_call_operand.vmem [shape: f32[2,128], index: 8, kind: output, shape index: {}]
  %s9 = sld [smem:[#allocation0]]
  $region42: #{_lambda_.1} parent=0
    _
  %s11 = ssub.s32 1, %s9
  %s12 = scalar_select 0, %s11, %s9
  %13 = sst [smem:[#allocation2]] %s0
  // Predicated region
  $region2: #{_lambda_.1} parent=0 // pred_check
    _
  $region3: #{_lambda_.1} parent=0 // pred_check_branch
    %15 = sbr.rel (0) target = $region5
  $region4: #{_lambda_.1} parent=0 // pred_region
    _
  $region5: #{_lambda_.1} parent=0 // pred_fallthru
    _
  // Predicated region
  $region6: #{_lambda_.1} parent=0 // pred_check
    _
  $region7: #{_lambda_.1} parent=0 // pred_check_branch
    %17 = sbr.rel (0) target = $region9
  $region8: #{_lambda_.1} parent=0 // pred_region
    _
  $region9: #{_lambda_.1} parent=0 // pred_fallthru
    _
  // Predicated region
  $region10: #{_lambda_.1} parent=0 // pred_check
    _
  $region11: #{_lambda_.1} parent=0 // pred_check_branch
    %19 = sbr.rel (0) target = $region13
  $region12: #{_lambda_.1} parent=0 // pred_region
    _
  $region13: #{_lambda_.1} parent=0 // pred_fallthru
    _
  // Predicated region
  $region14: #{_lambda_.1} parent=0 // pred_check
    _
  $region15: #{_lambda_.1} parent=0 // pred_check_branch
    %21 = sbr.rel (0) target = $region17
  $region16: #{_lambda_.1} parent=0 // pred_region
    _
  $region17: #{_lambda_.1} parent=0 // pred_fallthru
    _
  // Predicated region
  $region18: #{_lambda_.1} parent=0 // pred_check
    _
  $region19: #{_lambda_.1} parent=0 // pred_check_branch
    %23 = sbr.rel (0) target = $region21
  $region20: #{_lambda_.1} parent=0 // pred_region
    _
  $region21: #{_lambda_.1} parent=0 // pred_fallthru
    _
  // Predicated region
  $region22: #{_lambda_.1} parent=0 // pred_check
    _
  $region23: #{_lambda_.1} parent=0 // pred_check_branch
    %25 = sbr.rel (0) target = $region25
  $region24: #{_lambda_.1} parent=0 // pred_region
    _
  $region25: #{_lambda_.1} parent=0 // pred_fallthru
    _
  // Predicated region
  $region26: #{_lambda_.1} parent=0 // pred_check
    _
  $region27: #{_lambda_.1} parent=0 // pred_check_branch
    %27 = sbr.rel (0) target = $region29
  $region28: #{_lambda_.1} parent=0 // pred_region
    _
  $region29: #{_lambda_.1} parent=0 // pred_fallthru
    _
  // Predicated region
  $region30: #{_lambda_.1} parent=0 // pred_check
    _
  $region31: #{_lambda_.1} parent=0 // pred_check_branch
    %29 = sbr.rel (0) target = $region33
  $region32: #{_lambda_.1} parent=0 // pred_region
    _
  $region33: #{_lambda_.1} parent=0 // pred_fallthru
    _
  %s31 = sld [smem:[#allocation2]]
  %v32 = vld [vmem:[%s1] sm:$0x3]
  %v33 = vld [vmem:[%s2] sm:$0x77]
  %v34 = vld [vmem:[%s3] sm:$0x3]
  %36 = vset.pattern.permute.xlu0 0
  %37 = vperm.xlu0 %36, %v32
  %v38 = vpop.permute.xlu0 %37
  %v41 = vlaneseq
  %v42 = vshrl.u32 %v41, 7
  %v43 = vsub.s32 0, %v42
  %v44 = vrot.slane %v33, %v43
  %v45 = vlaneseq
  %v46 = vshrl.u32 %v45, 7
  %v47 = vsub.s32 4, %v46
  %v48 = vrot.slane %v33, %v47
  %v51 = vlaneseq
  %v52 = vshrl.u32 %v51, 7
  %v53 = vsub.s32 0, %v52
  %v54 = vrot.slane %v44, %v53
  %v55 = vlaneseq
  %v56 = vshrl.u32 %v55, 7
  %v57 = vsub.s32 0, %v56
  %v58 = vrot.slane %v48, %v57
  %v59 = vmul.f32 %v38, %v54
  %v60 = vmul.f32 %v38, %v58
  %v62 = vlaneseq
  %v63 = vshrl.u32 %v62, 7
  %v64 = vsub.s32 0, %v63
  %v65 = vrot.slane %v34, %v64
  %v66 = vlaneseq
  %v67 = vshrl.u32 %v66, 7
  %v68 = vsub.s32 1, %v67
  %v69 = vrot.slane %v34, %v68
  %v72 = vadd.f32 %v65, %v59
  %v73 = vadd.f32 %v69, %v60
  %74 = vset.pattern.permute.xlu0 1
  %75 = vperm.xlu0 %74, %v32
  %v76 = vpop.permute.xlu0 %75
  %v78 = vlaneseq
  %v79 = vshrl.u32 %v78, 7
  %v80 = vsub.s32 1, %v79
  %v81 = vrot.slane %v33, %v80
  %v82 = vlaneseq
  %v83 = vshrl.u32 %v82, 7
  %v84 = vsub.s32 5, %v83
  %v85 = vrot.slane %v33, %v84
  %v88 = vlaneseq
  %v89 = vshrl.u32 %v88, 7
  %v90 = vsub.s32 1, %v89
  %v91 = vrot.slane %v81, %v90
  %v92 = vlaneseq
  %v93 = vshrl.u32 %v92, 7
  %v94 = vsub.s32 1, %v93
  %v95 = vrot.slane %v85, %v94
  %v96 = vmul.f32 %v76, %v91
  %v97 = vmul.f32 %v76, %v95
  %v98 = vadd.f32 %v72, %v96
  %v99 = vadd.f32 %v73, %v97
  %100 = vset.pattern.permute.xlu0 2
  %101 = vperm.xlu0 %100, %v32
  %v102 = vpop.permute.xlu0 %101
  %v104 = vlaneseq
  %v105 = vshrl.u32 %v104, 7
  %v106 = vsub.s32 2, %v105
  %v107 = vrot.slane %v33, %v106
  %v108 = vlaneseq
  %v109 = vshrl.u32 %v108, 7
  %v110 = vsub.s32 6, %v109
  %v111 = vrot.slane %v33, %v110
  %v114 = vlaneseq
  %v115 = vshrl.u32 %v114, 7
  %v116 = vsub.s32 2, %v115
  %v117 = vrot.slane %v107, %v116
  %v118 = vlaneseq
  %v119 = vshrl.u32 %v118, 7
  %v120 = vsub.s32 2, %v119
  %v121 = vrot.slane %v111, %v120
  %v122 = vmul.f32 %v102, %v117
  %v123 = vmul.f32 %v102, %v121
  %v124 = vadd.f32 %v98, %v122
  %v125 = vadd.f32 %v99, %v123
  %v126 = vmax.f32 %v124, 0.0
  %v127 = vmax.f32 %v125, 0.0
  %v128 = vpack.c.bf16 %v126, %v126
  %v129 = vpack.c.bf16 %v127, %v127
  %v130 = vld [vmem:[%s4] sm:$0xff]
  %v131 = vld [vmem:[%s4 + $0x8] sm:$0xff]
  %v132 = vld [vmem:[%s4 + $0x10] sm:$0xff]
  %v133 = vld [vmem:[%s4 + $0x18] sm:$0xff]
  %v134 = vld [vmem:[%s4 + $0x20] sm:$0xff]
  %v135 = vld [vmem:[%s4 + $0x28] sm:$0xff]
  %v136 = vld [vmem:[%s4 + $0x30] sm:$0xff]
  %v137 = vld [vmem:[%s4 + $0x38] sm:$0xff]
  %v138 = vld [vmem:[%s4 + $0x40] sm:$0xff]
  %v139 = vld [vmem:[%s4 + $0x48] sm:$0xff]
  %v140 = vld [vmem:[%s4 + $0x50] sm:$0xff]
  %v141 = vld [vmem:[%s4 + $0x58] sm:$0xff]
  %v142 = vld [vmem:[%s4 + $0x60] sm:$0xff]
  %v143 = vld [vmem:[%s4 + $0x68] sm:$0xff]
  %v144 = vld [vmem:[%s4 + $0x70] sm:$0xff]
  %v145 = vld [vmem:[%s4 + $0x78] sm:$0xff]
  %v146 = vld [vmem:[%s4 + $0x80] sm:$0xff]
  %v147 = vld [vmem:[%s4 + $0x88] sm:$0xff]
  %v148 = vld [vmem:[%s4 + $0x90] sm:$0xff]
  %v149 = vld [vmem:[%s4 + $0x98] sm:$0xff]
  %v150 = vld [vmem:[%s4 + $0xa0] sm:$0xff]
  %v151 = vld [vmem:[%s4 + $0xa8] sm:$0xff]
  %v152 = vld [vmem:[%s4 + $0xb0] sm:$0xff]
  %v153 = vld [vmem:[%s4 + $0xb8] sm:$0xff]
  %v154 = vld [vmem:[%s4 + $0xc0] sm:$0xff]
  %v155 = vld [vmem:[%s4 + $0xc8] sm:$0xff]
  %v156 = vld [vmem:[%s4 + $0xd0] sm:$0xff]
  %v157 = vld [vmem:[%s4 + $0xd8] sm:$0xff]
  %v158 = vld [vmem:[%s4 + $0xe0] sm:$0xff]
  %v159 = vld [vmem:[%s4 + $0xe8] sm:$0xff]
  %v160 = vld [vmem:[%s4 + $0xf0] sm:$0xff]
  %v161 = vld [vmem:[%s4 + $0xf8] sm:$0xff]
  %v162 = vld [vmem:[%s5] sm:$0x3]
  %v164 = vlaneseq
  %v165 = vshrl.u32 %v164, 7
  %v166 = vsub.s32 0, %v165
  %v167 = vrot.slane %v162, %v166
  %v168 = vlaneseq
  %v169 = vshrl.u32 %v168, 7
  %v170 = vsub.s32 1, %v169
  %v171 = vrot.slane %v162, %v170
  %v206 = vunpack.c.l.b16 %v130
  %v207 = vunpack.c.h.b16 %v130
  %v208 = vunpack.c.l.b16 %v131
  %v209 = vunpack.c.h.b16 %v131
  %v210 = vunpack.c.l.b16 %v132
  %v211 = vunpack.c.h.b16 %v132
  %v212 = vunpack.c.l.b16 %v133
  %v213 = vunpack.c.h.b16 %v133
  %v214 = vunpack.c.l.b16 %v134
  %v215 = vunpack.c.h.b16 %v134
  %v216 = vunpack.c.l.b16 %v135
  %v217 = vunpack.c.h.b16 %v135
  %v218 = vunpack.c.l.b16 %v136
  %v219 = vunpack.c.h.b16 %v136
  %v220 = vunpack.c.l.b16 %v137
  %v221 = vunpack.c.h.b16 %v137
  %v222 = vunpack.c.l.b16 %v138
  %v223 = vunpack.c.h.b16 %v138
  %v224 = vunpack.c.l.b16 %v139
  %v225 = vunpack.c.h.b16 %v139
  %v226 = vunpack.c.l.b16 %v140
  %v227 = vunpack.c.h.b16 %v140
  %v228 = vunpack.c.l.b16 %v141
  %v229 = vunpack.c.h.b16 %v141
  %v230 = vunpack.c.l.b16 %v142
  %v231 = vunpack.c.h.b16 %v142
  %v232 = vunpack.c.l.b16 %v143
  %v233 = vunpack.c.h.b16 %v143
  %v234 = vunpack.c.l.b16 %v144
  %v235 = vunpack.c.h.b16 %v144
  %v236 = vunpack.c.l.b16 %v145
  %v237 = vunpack.c.h.b16 %v145
  %v238 = vunpack.c.l.b16 %v146
  %v239 = vunpack.c.h.b16 %v146
  %v240 = vunpack.c.l.b16 %v147
  %v241 = vunpack.c.h.b16 %v147
  %v242 = vunpack.c.l.b16 %v148
  %v243 = vunpack.c.h.b16 %v148
  %v244 = vunpack.c.l.b16 %v149
  %v245 = vunpack.c.h.b16 %v149
  %v246 = vunpack.c.l.b16 %v150
  %v247 = vunpack.c.h.b16 %v150
  %v248 = vunpack.c.l.b16 %v151
  %v249 = vunpack.c.h.b16 %v151
  %v250 = vunpack.c.l.b16 %v152
  %v251 = vunpack.c.h.b16 %v152
  %v252 = vunpack.c.l.b16 %v153
  %v253 = vunpack.c.h.b16 %v153
  %v254 = vunpack.c.l.b16 %v154
  %v255 = vunpack.c.h.b16 %v154
  %v256 = vunpack.c.l.b16 %v155
  %v257 = vunpack.c.h.b16 %v155
  %v258 = vunpack.c.l.b16 %v156
  %v259 = vunpack.c.h.b16 %v156
  %v260 = vunpack.c.l.b16 %v157
  %v261 = vunpack.c.h.b16 %v157
  %v262 = vunpack.c.l.b16 %v158
  %v263 = vunpack.c.h.b16 %v158
  %v264 = vunpack.c.l.b16 %v159
  %v265 = vunpack.c.h.b16 %v159
  %v266 = vunpack.c.l.b16 %v160
  %v267 = vunpack.c.h.b16 %v160
  %v268 = vunpack.c.l.b16 %v161
  %v269 = vunpack.c.h.b16 %v161
  %v270 = vpack.c.b16 %v208, %v206
  %v271 = vpack.c.b16 %v209, %v207
  %v272 = vpack.c.b16 %v212, %v210
  %v273 = vpack.c.b16 %v213, %v211
  %v274 = vpack.c.b16 %v216, %v214
  %v275 = vpack.c.b16 %v217, %v215
  %v276 = vpack.c.b16 %v220, %v218
  %v277 = vpack.c.b16 %v221, %v219
  %v278 = vpack.c.b16 %v224, %v222
  %v279 = vpack.c.b16 %v225, %v223
  %v280 = vpack.c.b16 %v228, %v226
  %v281 = vpack.c.b16 %v229, %v227
  %v282 = vpack.c.b16 %v232, %v230
  %v283 = vpack.c.b16 %v233, %v231
  %v284 = vpack.c.b16 %v236, %v234
  %v285 = vpack.c.b16 %v237, %v235
  %v286 = vpack.c.b16 %v240, %v238
  %v287 = vpack.c.b16 %v241, %v239
  %v288 = vpack.c.b16 %v244, %v242
  %v289 = vpack.c.b16 %v245, %v243
  %v290 = vpack.c.b16 %v248, %v246
  %v291 = vpack.c.b16 %v249, %v247
  %v292 = vpack.c.b16 %v252, %v250
  %v293 = vpack.c.b16 %v253, %v251
  %v294 = vpack.c.b16 %v256, %v254
  %v295 = vpack.c.b16 %v257, %v255
  %v296 = vpack.c.b16 %v260, %v258
  %v297 = vpack.c.b16 %v261, %v259
  %v298 = vpack.c.b16 %v264, %v262
  %v299 = vpack.c.b16 %v265, %v263
  %v300 = vpack.c.b16 %v268, %v266
  %v301 = vpack.c.b16 %v269, %v267
  %334 = vmatprep.subr.bf16.mxu0 %v271
  %335 = vmatpush1.bf16.msra.mxu0 %v270
  %336 = vmatprep.subr.bf16.mxu0 %v273
  %337 = vmatpush1.bf16.msra.mxu0 %v272
  %338 = vmatprep.subr.bf16.mxu0 %v275
  %339 = vmatpush1.bf16.msra.mxu0 %v274
  %340 = vmatprep.subr.bf16.mxu0 %v277
  %341 = vmatpush1.bf16.msra.mxu0 %v276
  %342 = vmatprep.subr.bf16.mxu0 %v279
  %343 = vmatpush1.bf16.msra.mxu0 %v278
  %344 = vmatprep.subr.bf16.mxu0 %v281
  %345 = vmatpush1.bf16.msra.mxu0 %v280
  %346 = vmatprep.subr.bf16.mxu0 %v283
  %347 = vmatpush1.bf16.msra.mxu0 %v282
  %348 = vmatprep.subr.bf16.mxu0 %v285
  %349 = vmatpush1.bf16.msra.mxu0 %v284
  %350 = vmatprep.subr.bf16.mxu0 %v287
  %351 = vmatpush1.bf16.msra.mxu0 %v286
  %352 = vmatprep.subr.bf16.mxu0 %v289
  %353 = vmatpush1.bf16.msra.mxu0 %v288
  %354 = vmatprep.subr.bf16.mxu0 %v291
  %355 = vmatpush1.bf16.msra.mxu0 %v290
  %356 = vmatprep.subr.bf16.mxu0 %v293
  %357 = vmatpush1.bf16.msra.mxu0 %v292
  %358 = vmatprep.subr.bf16.mxu0 %v295
  %359 = vmatpush1.bf16.msra.mxu0 %v294
  %360 = vmatprep.subr.bf16.mxu0 %v297
  %361 = vmatpush1.bf16.msra.mxu0 %v296
  %362 = vmatprep.subr.bf16.mxu0 %v299
  %363 = vmatpush1.bf16.msra.mxu0 %v298
  %364 = vmatprep.subr.bf16.mxu0 %v301
  %365 = vmatpush1.bf16.msra.mxu0 %v300
  %366 = vmatprep.mubr.bf16.mxu0 %v129
  %367 = vmatmul.mubr.bf16.gmra.mrb[0].mxu0 %v128
  %v368 = vpop.f32.mrb[0].mxu0
  %v369 = vadd.f32 %v167, %v368
  %v370 = vpop.f32.mrb[0].mxu0
  %v371 = vadd.f32 %v171, %v370
  %v372 = vpop.f32.mrb[0].mxu0
  %v373 = vpop.f32.mrb[0].mxu0
  %374 = vdwg.mxu0
  %v375 = vmax.f32 %v369, 0.0
  %v376 = vmax.f32 %v371, 0.0
  %v377 = vpack.c.bf16 %v375, %v375
  %v378 = vpack.c.bf16 %v376, %v376
  %v379 = vld [vmem:[%s6] sm:$0xf]
  %v380 = vld [vmem:[%s6 + $0x4] sm:$0xf]
  %v381 = vld [vmem:[%s6 + $0x8] sm:$0xf]
  %v382 = vld [vmem:[%s6 + $0xc] sm:$0xf]
  %v383 = vld [vmem:[%s6 + $0x10] sm:$0xf]
  %v384 = vld [vmem:[%s6 + $0x14] sm:$0xf]
  %v385 = vld [vmem:[%s6 + $0x18] sm:$0xf]
  %v386 = vld [vmem:[%s6 + $0x1c] sm:$0xf]
  %v387 = vld [vmem:[%s6 + $0x20] sm:$0xf]
  %v388 = vld [vmem:[%s6 + $0x24] sm:$0xf]
  %v389 = vld [vmem:[%s6 + $0x28] sm:$0xf]
  %v390 = vld [vmem:[%s6 + $0x2c] sm:$0xf]
  %v391 = vld [vmem:[%s6 + $0x30] sm:$0xf]
  %v392 = vld [vmem:[%s6 + $0x34] sm:$0xf]
  %v393 = vld [vmem:[%s6 + $0x38] sm:$0xf]
  %v394 = vld [vmem:[%s6 + $0x3c] sm:$0xf]
  %v395 = vld [vmem:[%s6 + $0x40] sm:$0xf]
  %v396 = vld [vmem:[%s6 + $0x44] sm:$0xf]
  %v397 = vld [vmem:[%s6 + $0x48] sm:$0xf]
  %v398 = vld [vmem:[%s6 + $0x4c] sm:$0xf]
  %v399 = vld [vmem:[%s6 + $0x50] sm:$0xf]
  %v400 = vld [vmem:[%s6 + $0x54] sm:$0xf]
  %v401 = vld [vmem:[%s6 + $0x58] sm:$0xf]
  %v402 = vld [vmem:[%s6 + $0x5c] sm:$0xf]
  %v403 = vld [vmem:[%s6 + $0x60] sm:$0xf]
  %v404 = vld [vmem:[%s6 + $0x64] sm:$0xf]
  %v405 = vld [vmem:[%s6 + $0x68] sm:$0xf]
  %v406 = vld [vmem:[%s6 + $0x6c] sm:$0xf]
  %v407 = vld [vmem:[%s6 + $0x70] sm:$0xf]
  %v408 = vld [vmem:[%s6 + $0x74] sm:$0xf]
  %v409 = vld [vmem:[%s6 + $0x78] sm:$0xf]
  %v410 = vld [vmem:[%s6 + $0x7c] sm:$0xf]
  %v411 = vld [vmem:[%s7] sm:$0x1]
  %v413 = vlaneseq
  %v414 = vshrl.u32 %v413, 7
  %v415 = vsub.s32 0, %v414
  %v416 = vrot.slane %v411, %v415
  %v450 = vunpack.c.l.b16 %v379
  %v451 = vunpack.c.l.b16 %v380
  %v452 = vunpack.c.l.b16 %v381
  %v453 = vunpack.c.l.b16 %v382
  %v454 = vunpack.c.l.b16 %v383
  %v455 = vunpack.c.l.b16 %v384
  %v456 = vunpack.c.l.b16 %v385
  %v457 = vunpack.c.l.b16 %v386
  %v458 = vunpack.c.l.b16 %v387
  %v459 = vunpack.c.l.b16 %v388
  %v460 = vunpack.c.l.b16 %v389
  %v461 = vunpack.c.l.b16 %v390
  %v462 = vunpack.c.l.b16 %v391
  %v463 = vunpack.c.l.b16 %v392
  %v464 = vunpack.c.l.b16 %v393
  %v465 = vunpack.c.l.b16 %v394
  %v466 = vunpack.c.l.b16 %v395
  %v467 = vunpack.c.l.b16 %v396
  %v468 = vunpack.c.l.b16 %v397
  %v469 = vunpack.c.l.b16 %v398
  %v470 = vunpack.c.l.b16 %v399
  %v471 = vunpack.c.l.b16 %v400
  %v472 = vunpack.c.l.b16 %v401
  %v473 = vunpack.c.l.b16 %v402
  %v474 = vunpack.c.l.b16 %v403
  %v475 = vunpack.c.l.b16 %v404
  %v476 = vunpack.c.l.b16 %v405
  %v477 = vunpack.c.l.b16 %v406
  %v478 = vunpack.c.l.b16 %v407
  %v479 = vunpack.c.l.b16 %v408
  %v480 = vunpack.c.l.b16 %v409
  %v481 = vunpack.c.l.b16 %v410
  %v482 = vpack.c.b16 %v451, %v450
  %v483 = vpack.c.b16 %v453, %v452
  %v484 = vpack.c.b16 %v455, %v454
  %v485 = vpack.c.b16 %v457, %v456
  %v486 = vpack.c.b16 %v459, %v458
  %v487 = vpack.c.b16 %v461, %v460
  %v488 = vpack.c.b16 %v463, %v462
  %v489 = vpack.c.b16 %v465, %v464
  %v490 = vpack.c.b16 %v467, %v466
  %v491 = vpack.c.b16 %v469, %v468
  %v492 = vpack.c.b16 %v471, %v470
  %v493 = vpack.c.b16 %v473, %v472
  %v494 = vpack.c.b16 %v475, %v474
  %v495 = vpack.c.b16 %v477, %v476
  %v496 = vpack.c.b16 %v479, %v478
  %v497 = vpack.c.b16 %v481, %v480
  %514 = vmatprep.subr.bf16.mxu0 0
  %515 = vmatpush1.bf16.msra.mxu0 %v482
  %516 = vmatprep.subr.bf16.mxu0 0
  %517 = vmatpush1.bf16.msra.mxu0 %v483
  %518 = vmatprep.subr.bf16.mxu0 0
  %519 = vmatpush1.bf16.msra.mxu0 %v484
  %520 = vmatprep.subr.bf16.mxu0 0
  %521 = vmatpush1.bf16.msra.mxu0 %v485
  %522 = vmatprep.subr.bf16.mxu0 0
  %523 = vmatpush1.bf16.msra.mxu0 %v486
  %524 = vmatprep.subr.bf16.mxu0 0
  %525 = vmatpush1.bf16.msra.mxu0 %v487
  %526 = vmatprep.subr.bf16.mxu0 0
  %527 = vmatpush1.bf16.msra.mxu0 %v488
  %528 = vmatprep.subr.bf16.mxu0 0
  %529 = vmatpush1.bf16.msra.mxu0 %v489
  %530 = vmatprep.subr.bf16.mxu0 0
  %531 = vmatpush1.bf16.msra.mxu0 %v490
  %532 = vmatprep.subr.bf16.mxu0 0
  %533 = vmatpush1.bf16.msra.mxu0 %v491
  %534 = vmatprep.subr.bf16.mxu0 0
  %535 = vmatpush1.bf16.msra.mxu0 %v492
  %536 = vmatprep.subr.bf16.mxu0 0
  %537 = vmatpush1.bf16.msra.mxu0 %v493
  %538 = vmatprep.subr.bf16.mxu0 0
  %539 = vmatpush1.bf16.msra.mxu0 %v494
  %540 = vmatprep.subr.bf16.mxu0 0
  %541 = vmatpush1.bf16.msra.mxu0 %v495
  %542 = vmatprep.subr.bf16.mxu0 0
  %543 = vmatpush1.bf16.msra.mxu0 %v496
  %544 = vmatprep.subr.bf16.mxu0 0
  %545 = vmatpush1.bf16.msra.mxu0 %v497
  %546 = vmatprep.mubr.bf16.mxu0 %v378
  %547 = vmatmul.mubr.bf16.gmra.mrb[0].mxu0 %v377
  %v548 = vpop.f32.mrb[0].mxu0
  %v549 = vadd.f32 %v416, %v548
  %v550 = vpop.f32.mrb[0].mxu0
  %v551 = vpop.f32.mrb[0].mxu0
  %v552 = vpop.f32.mrb[0].mxu0
  %553 = vdwg.mxu0
  %v554 = vtanh.pop %v549
  %v555 = vstv %s31
  %v556 = vmul.f32 %v554, %v555
  %557 = vst [vmem:[%s8] sm:$0x3] %v556
  // Predicated region
  $region34: #{_lambda_.1} parent=0 // pred_check
    _
  $region35: #{_lambda_.1} parent=0 // pred_check_branch
    %559 = sbr.rel (0) target = $region37
  $region36: #{_lambda_.1} parent=0 // pred_region
    _
  $region37: #{_lambda_.1} parent=0 // pred_fallthru
    _
  // Predicated region
  $region38: #{_lambda_.1} parent=0 // pred_check
    _
  $region39: #{_lambda_.1} parent=0 // pred_check_branch
    %561 = sbr.rel (0) target = $region41
  $region40: #{_lambda_.1} parent=0 // pred_region
    _
  $region41: #{_lambda_.1} parent=0 // pred_fallthru
    _

</llo_original>
